<compile_context>
chip_gen: v6e
topology: v6e:2x2x1
jax: 0.10.0
libtpu: 0.0.40
codegen_flags: <defaults>
</compile_context>

<pallas_src>
import jax
import jax.numpy as jnp
from jax.experimental import pallas as pl
from jax.experimental.pallas import tpu as pltpu


def _lateral_cat_kernel(xl_ref, x_ref, w_ref, b_ref, o_ref):
    # xl_ref: (C1, TS)     lateral input: channels on sublanes, spatial on lanes
    # x_ref : (CX, TS)     pass-through input
    # w_ref : (C2, C1)     folded conv+BN weight (VMEM-resident)
    # b_ref : (C2, 1)      folded conv+BN bias, f32 (broadcasts over lanes)
    # o_ref : (C2+CX, TS)  lane-dense output block
    c2 = w_ref.shape[0]
    y = jnp.dot(w_ref[...], xl_ref[...], preferred_element_type=jnp.float32)
    y = y + b_ref[...]
    y = jnp.where(y > 0, y, 0.1 * y)            # LeakyReLU(negative_slope=0.1), in f32
    # TODO(synk): for bf16 outputs with C2 not a multiple of 16, the two stores each
    # cover half a (16,128) packed tile (masked vst); pad C2 or fuse into one store.
    o_ref[0:c2, :] = y.astype(o_ref.dtype)      # conv branch -> first C2 channel rows
    o_ref[c2:, :] = x_ref[...]                  # pass-through -> remaining CX rows


def _choose_spatial_tile(hw128, per_lane_bytes, n_batch,
                         vmem_budget_bytes=16 << 20, min_split_lanes=2048):
    """Largest 128-aligned spatial tile dividing hw128 that fits the VMEM budget.

    Prefers >=2 grid steps when N == 1 (v7x megacore), but never at the cost of
    tiles too small to amortize the ~600-cycle per-step overhead.
    """
    n128 = hw128 // 128
    max_lanes = max(128, ((vmem_budget_bytes // (2 * per_lane_bytes)) // 128) * 128)
    fitting = [(n128 // d) * 128 for d in range(1, n128 + 1)
               if n128 % d == 0 and (n128 // d) * 128 <= max_lanes]
    if not fitting:
        return 128
    fitting.sort(reverse=True)
    if n_batch >= 2:
        return fitting[0]           # batch axis already gives >=2 parallel steps
    for ts in fitting:              # N == 1: split spatial axis if tiles stay big
        if hw128 // ts >= 2 and ts >= min_split_lanes:
            return ts
    return fitting[0]


def lateral_cat_pallas(x_nchw, xl_nchw, w_fold, b_fold, *, ts=None,
                       vmem_budget_bytes=16 << 20):
    """x_nchw: (N, CX, H, W), xl_nchw: (N, C1, H, W) -> (N, C2+CX, H, W)."""
    N, CX, H, W = x_nchw.shape
    _, C1, _, _ = xl_nchw.shape
    C2 = w_fold.shape[0]
    HW = H * W
    out_dtype = x_nchw.dtype

    # Match the dot inputs' dtype (native bf16 MXU path when activations are bf16);
    # bias stays f32 so the accumulate + LeakyReLU happen in f32.
    w_used = w_fold.astype(xl_nchw.dtype)
    b_used = b_fold.astype(jnp.float32)

    # Free reshapes (spatial stays contiguous / lane-dense): no data movement.
    x3 = x_nchw.reshape(N, CX, HW)
    xl3 = xl_nchw.reshape(N, C1, HW)

    # Pad HW up to a multiple of 128 so every store is a full-lane (unmasked) vst.
    hw128 = ((HW + 127) // 128) * 128
    if hw128 != HW:
        pad = hw128 - HW
        x3 = jnp.pad(x3, ((0, 0), (0, 0), (0, pad)))
        xl3 = jnp.pad(xl3, ((0, 0), (0, 0), (0, pad)))

    per_lane_bytes = ((C1 + CX) * xl3.dtype.itemsize
                      + (C2 + CX) * jnp.dtype(out_dtype).itemsize)
    if ts is None:
        ts = _choose_spatial_tile(hw128, per_lane_bytes, N, vmem_budget_bytes)
    ts = min(ts, hw128)
    assert ts % 128 == 0 and hw128 % ts == 0, (ts, hw128)

    out3 = pl.pallas_call(
        _lateral_cat_kernel,
        out_shape=jax.ShapeDtypeStruct((N, C2 + CX, hw128), out_dtype),
        grid_spec=pltpu.PrefetchScalarGridSpec(
            num_scalar_prefetch=0,
            grid=(N, hw128 // ts),
            in_specs=[
                pl.BlockSpec((None, C1, ts), lambda n, s: (n, 0, s)),
                pl.BlockSpec((None, CX, ts), lambda n, s: (n, 0, s)),
                pl.BlockSpec((C2, C1), lambda n, s: (0, 0)),   # resident weight
                pl.BlockSpec((C2, 1), lambda n, s: (0, 0)),    # resident bias
            ],
            out_specs=pl.BlockSpec((None, C2 + CX, ts), lambda n, s: (n, 0, s)),
        ),
        compiler_params=pltpu.CompilerParams(
            dimension_semantics=("parallel", "parallel")),
    )(xl3, x3, w_used, b_used)

    if hw128 != HW:
        out3 = out3[:, :, :HW]
    return out3.reshape(N, C2 + CX, H, W)


def fold_bn_into_conv1x1(w_c2c1, gamma, beta, running_mean, running_var, eps=1e-4):
    """Fold inference-mode BatchNorm into a 1x1 conv (no conv bias).

    eps=1e-4 matches the spec's Conv: nn.BatchNorm2d(c2, momentum=0.03, eps=0.0001).
    """
    scale = gamma / jnp.sqrt(running_var + eps)           # (C2,)
    w_fold = w_c2c1 * scale[:, None]                      # (C2, C1)
    b_fold = (beta - running_mean * scale)[:, None]       # (C2, 1)
    return w_fold.astype(jnp.float32), b_fold.astype(jnp.float32)


def lateral_cat_reference(x_nchw, xl_nchw, w_fold, b_fold):
    # Pure-JAX reference for correctness check.
    y = jnp.einsum("kc,nchw->nkhw", w_fold, xl_nchw) + b_fold.reshape(1, -1, 1, 1)
    y = jnp.where(y > 0, y, 0.1 * y)
    return jnp.concatenate([y, x_nchw], axis=1)


if __name__ == "__main__":
    key = jax.random.PRNGKey(0)
    k_x, k_xl, k_w, k_g, k_b, k_m, k_v = jax.random.split(key, 7)

    # Small shapes consistent with LateralCat(f1, c1=4, c2=8) on a feature map.
    N = 2
    C1, C2, CX = 4, 8, 8

    # Deterministic synthetic params (Conv2d(c1, c2, 1, bias=False) + BatchNorm2d(c2, eps=1e-4)).
    w_conv = jax.random.normal(k_w, (C2, C1), dtype=jnp.float32) * 0.1  # (C2, C1, 1, 1) squeezed
    gamma = 1.0 + 0.1 * jax.random.normal(k_g, (C2,), dtype=jnp.float32)
    beta = 0.1 * jax.random.normal(k_b, (C2,), dtype=jnp.float32)
    running_mean = 0.1 * jax.random.normal(k_m, (C2,), dtype=jnp.float32)
    running_var = jnp.abs(jax.random.normal(k_v, (C2,), dtype=jnp.float32)) + 0.5
    # TODO(synk): PyTorch BN in train mode would use batch stats; inference-mode running stats folded here.
    w_fold, b_fold = fold_bn_into_conv1x1(w_conv, gamma, beta, running_mean, running_var)

    run = jax.jit(lateral_cat_pallas)

    # Case 1: HW already a multiple of 128 (16x16 -> 256 lanes, ts == HW).
    x = jax.random.normal(k_x, (N, CX, 16, 16), dtype=jnp.float32)
    x_l = jax.random.normal(k_xl, (N, C1, 16, 16), dtype=jnp.float32)
    out = jax.block_until_ready(run(x, x_l, w_fold, b_fold))
    ref = lateral_cat_reference(x, x_l, w_fold, b_fold)
    assert out.shape == (N, C2 + CX, 16, 16), out.shape
    assert jnp.allclose(out, ref, atol=1e-5, rtol=1e-5), float(jnp.max(jnp.abs(out - ref)))

    # Case 2: real YOLO-style non-128 feature map (13x13 -> 169 lanes, padded to 256).
    x2 = jax.random.normal(k_x, (N, CX, 13, 13), dtype=jnp.float32)
    x_l2 = jax.random.normal(k_xl, (N, C1, 13, 13), dtype=jnp.float32)
    out2 = jax.block_until_ready(run(x2, x_l2, w_fold, b_fold))
    ref2 = lateral_cat_reference(x2, x_l2, w_fold, b_fold)
    assert out2.shape == (N, C2 + CX, 13, 13), out2.shape
    assert jnp.allclose(out2, ref2, atol=1e-5, rtol=1e-5), float(jnp.max(jnp.abs(out2 - ref2)))

    print("KERNEL_OK")
</pallas_src>

<mosaic_0001>
module attributes {stable_mosaic.version = 11 : i64} {
  func.func @_lateral_cat_kernel(%arg0: i32, %arg1: i32, %arg2: memref<1x4x256xf32, #tpu.memory_space<vmem>>, %arg3: memref<1x8x256xf32, #tpu.memory_space<vmem>>, %arg4: memref<8x4xf32, #tpu.memory_space<vmem>>, %arg5: memref<8x1xf32, #tpu.memory_space<vmem>>, %arg6: memref<1x16x256xf32, #tpu.memory_space<vmem>>) attributes {dimension_semantics = [#tpu.dimension_semantics<parallel>, #tpu.dimension_semantics<parallel>], iteration_bounds = array<i64: 2, 1>, scalar_prefetch = 0 : i64, scratch_operands = 0 : i64, tpu.core_type = #tpu.core_type<tc>, window_params = [{transform_indices = @transform_0, window_bounds = array<i64: 1, 4, 256>}, {transform_indices = @transform_1, window_bounds = array<i64: 1, 8, 256>}, {pipeline_mode = #tpu.pipeline_mode<synchronous>, transform_indices = @transform_2, window_bounds = array<i64: 8, 4>}, {pipeline_mode = #tpu.pipeline_mode<synchronous>, transform_indices = @transform_3, window_bounds = array<i64: 8, 1>}, {transform_indices = @transform_4, window_bounds = array<i64: 1, 16, 256>}]} {
    %c0 = arith.constant 0 : index
    %c0_0 = arith.constant 0 : index
    %0 = vector.load %arg4[%c0, %c0_0] : memref<8x4xf32, #tpu.memory_space<vmem>>, vector<8x4xf32>
    %c0_1 = arith.constant 0 : index
    %c0_2 = arith.constant 0 : index
    %c0_3 = arith.constant 0 : index
    %1 = vector.load %arg2[%c0_1, %c0_2, %c0_3] : memref<1x4x256xf32, #tpu.memory_space<vmem>>, vector<1x4x256xf32>
    %2 = vector.shape_cast %1 : vector<1x4x256xf32> to vector<4x256xf32>
    %cst = arith.constant dense<0.000000e+00> : vector<8x256xf32>
    %3 = tpu.matmul %0, %2, %cst {dimension_numbers = #tpu.dot_dimension_numbers<[1], [0], [0], [1], [0, 0, 1, 1], [], []>} : vector<8x4xf32>, vector<4x256xf32>, vector<8x256xf32> -> vector<8x256xf32>
    %c0_4 = arith.constant 0 : index
    %c0_5 = arith.constant 0 : index
    %4 = vector.load %arg5[%c0_4, %c0_5] : memref<8x1xf32, #tpu.memory_space<vmem>>, vector<8x1xf32>
    %5 = vector.broadcast %4 : vector<8x1xf32> to vector<8x256xf32>
    %6 = arith.addf %3, %5 : vector<8x256xf32>
    %cst_6 = arith.constant 0.000000e+00 : f32
    %7 = vector.broadcast %cst_6 : f32 to vector<8x256xf32>
    %8 = arith.cmpf ogt, %6, %7 : vector<8x256xf32>
    %cst_7 = arith.constant 1.000000e-01 : f32
    %9 = vector.broadcast %cst_7 : f32 to vector<8x256xf32>
    %10 = arith.mulf %9, %6 : vector<8x256xf32>
    %11 = arith.select %8, %6, %10 : vector<8x256xi1>, vector<8x256xf32>
    %c0_8 = arith.constant 0 : index
    %c0_9 = arith.constant 0 : index
    %c0_10 = arith.constant 0 : index
    %12 = vector.load %arg6[%c0_8, %c0_9, %c0_10] : memref<1x16x256xf32, #tpu.memory_space<vmem>>, vector<1x8x256xf32>
    %13 = vector.shape_cast %12 : vector<1x8x256xf32> to vector<8x256xf32>
    %14 = vector.shape_cast %11 : vector<8x256xf32> to vector<1x8x256xf32>
    tpu.vector_store %arg6[%c0_8, %c0_9, %c0_10], %14 {strides = array<i32>} : memref<1x16x256xf32, #tpu.memory_space<vmem>>, vector<1x8x256xf32>,
    %c0_11 = arith.constant 0 : index
    %c0_12 = arith.constant 0 : index
    %c0_13 = arith.constant 0 : index
    %15 = vector.load %arg3[%c0_11, %c0_12, %c0_13] : memref<1x8x256xf32, #tpu.memory_space<vmem>>, vector<1x8x256xf32>
    %16 = vector.shape_cast %15 : vector<1x8x256xf32> to vector<8x256xf32>
    %c0_14 = arith.constant 0 : index
    %c8 = arith.constant 8 : index
    %c0_15 = arith.constant 0 : index
    %17 = vector.load %arg6[%c0_14, %c8, %c0_15] : memref<1x16x256xf32, #tpu.memory_space<vmem>>, vector<1x8x256xf32>
    %18 = vector.shape_cast %17 : vector<1x8x256xf32> to vector<8x256xf32>
    %19 = vector.shape_cast %16 : vector<8x256xf32> to vector<1x8x256xf32>
    tpu.vector_store %arg6[%c0_14, %c8, %c0_15], %19 {strides = array<i32>} : memref<1x16x256xf32, #tpu.memory_space<vmem>>, vector<1x8x256xf32>,
    return
  }
  func.func @transform_0(%arg0: i32, %arg1: i32) -> (i32, i32, i32) {
    %c0_i32 = arith.constant 0 : i32
    %c0_i32_0 = arith.constant 0 : i32
    return %arg0, %c0_i32, %arg1 : i32, i32, i32
  }
  func.func @transform_1(%arg0: i32, %arg1: i32) -> (i32, i32, i32) {
    %c0_i32 = arith.constant 0 : i32
    %c0_i32_0 = arith.constant 0 : i32
    return %arg0, %c0_i32, %arg1 : i32, i32, i32
  }
  func.func @transform_2(%arg0: i32, %arg1: i32) -> (i32, i32) {
    %c0_i32 = arith.constant 0 : i32
    %c0_i32_0 = arith.constant 0 : i32
    %c0_i32_1 = arith.constant 0 : i32
    return %c0_i32, %c0_i32_0 : i32, i32
  }
  func.func @transform_3(%arg0: i32, %arg1: i32) -> (i32, i32) {
    %c0_i32 = arith.constant 0 : i32
    %c0_i32_0 = arith.constant 0 : i32
    %c0_i32_1 = arith.constant 0 : i32
    return %c0_i32, %c0_i32_0 : i32, i32
  }
  func.func @transform_4(%arg0: i32, %arg1: i32) -> (i32, i32, i32) {
    %c0_i32 = arith.constant 0 : i32
    %c0_i32_0 = arith.constant 0 : i32
    return %arg0, %c0_i32, %arg1 : i32, i32, i32
  }
}

</mosaic_0001>

<llo_original>
// kernel: lateral_cat_pallas.1
$region0: #{lateral_cat_pallas.1}
  #allocation0 [shape = 'u32[]', space=smem, size = 0x4, offset = 0x4, fixed_abs, tag = 'smem constant byte address 0x4 - core index']
  #allocation1 [shape = 'u32[144,128]{1,0:T(1,128)}', space=vmem, size = 0x12000, scoped, tag = 'internal scratch']
  %s0 = inlined_call_operand.vmem [shape: f32[2,4,256], index: 0, kind: input, shape index: {}]
  %s1 = inlined_call_operand.vmem [shape: f32[2,8,256], index: 1, kind: input, shape index: {}]
  %s2 = inlined_call_operand.vmem [shape: f32[8,4], index: 2, kind: input, shape index: {}]
  %s3 = inlined_call_operand.vmem [shape: f32[8,1], index: 3, kind: input, shape index: {}]
  %s4 = inlined_call_operand.vmem [shape: f32[2,16,256], index: 4, kind: output, shape index: {}]
  %s5 = sld [smem:[#allocation0]]
  $region49: #{lateral_cat_pallas.1} parent=0
    _
  %s7 = ssub.s32 1, %s5
  %s8 = scalar_select 0, %s7, %s5
  loop: start=0, step=1, limit=4
  $region2: #{lateral_cat_pallas.1} parent=0 // loop_pre_header
    _
  $region3: #{lateral_cat_pallas.1} parent=0 // loop_header
    %s10 = sphi 0, %s14
    %p11 = scmp.ge.s32.totalorder %s10, 4
    %s17 = sphi 0, %s29
    %s18 = sphi 0, %s25
    %s19 = sphi 0, %s17
    %s20 = sphi 0, %s18
    %s21 = sphi 0, %s19
    %s22 = sphi 0, %s20
    %s34 = sphi 0, %s36
    %s37 = sphi 0, %s34
    %s38 = sphi 0, %s37
    %s54 = sphi 0, %s38
    %s62 = sphi 0, %s64
    %s65 = sphi 0, %s62
    %s66 = sphi 0, %s65
    %s82 = sphi 0, %s66
    %s86 = sphi 0, %s86
    %s88 = sphi 0, %s86
    %s89 = sphi 0, %s88
    %s103 = sphi 0, %s89
    %s107 = sphi 0, %s107
    %s109 = sphi 0, %s107
    %s110 = sphi 0, %s109
    %s124 = sphi 0, %s110
    %s132 = sphi 0, %s134
    %s135 = sphi 0, %s132
    %s136 = sphi 0, %s135
    %s152 = sphi 0, %s136
  $region4: #{lateral_cat_pallas.1} parent=0 // loop_header_branch
    %13 = sbr.rel (%p11) target = $region8
  $region5: #{lateral_cat_pallas.1} parent=0 // loop_body
    %s15 = ssub.s32 %s10, 1
    %s16 = ssub.s32 %s10, 2
    %s23 = sadd.s32 1, %s18
    %p24 = scmp.ge.s32.totalorder %s23, 1
    %s25 = scalar_select %p24, 0, %s23
    %s26 = sadd.s32 1, %s17
    %s27 = scalar_select %p24, %s26, %s17
    %p28 = scmp.ge.s32.totalorder %s27, 2
    %s29 = scalar_select %p28, 0, %s27
    %s30 = ssub.s32 %s17, %s29
    %s31 = ssub.s32 %s18, %s25
    %s32 = sor.u32 %s30, %s31
    %p33 = scmp.eq.s32.totalorder %s32, 0
    %s35 = sadd.s32 %s34, 1
    %s36 = scalar_select %p33, %s34, %s35
    %p39 = pneg %p33
    %p40 = scmp.eq.s32.totalorder %s10, 1
    %p41 = por %p39, %p40
    %p42 = scmp.ne.s32.totalorder %s34, %s37
    %p43 = scmp.eq.s32.totalorder %s10, 0
    %p44 = por %p42, %p43
    %p45 = scmp.ne.s32.totalorder %s34, %s37
    %p46 = scmp.eq.s32.totalorder %s15, 1
    %p47 = por %p45, %p46
    %p48 = scmp.ne.s32.totalorder %s37, %s38
    %p49 = scmp.eq.s32.totalorder %s15, 0
    %p50 = por %p48, %p49
    %p51 = scmp.ne.s32.totalorder %s37, %s38
    %p52 = scmp.eq.s32.totalorder %s16, 1
    %p53 = por %p51, %p52
    %p55 = scmp.ne.s32.totalorder %s38, %s54
    %p56 = scmp.eq.s32.totalorder %s16, 0
    %p57 = por %p55, %p56
    %s58 = ssub.s32 %s17, %s29
    %s59 = ssub.s32 %s18, %s25
    %s60 = sor.u32 %s58, %s59
    %p61 = scmp.eq.s32.totalorder %s60, 0
    %s63 = sadd.s32 %s62, 1
    %s64 = scalar_select %p61, %s62, %s63
    %p67 = pneg %p61
    %p68 = scmp.eq.s32.totalorder %s10, 1
    %p69 = por %p67, %p68
    %p70 = scmp.ne.s32.totalorder %s62, %s65
    %p71 = scmp.eq.s32.totalorder %s10, 0
    %p72 = por %p70, %p71
    %p73 = scmp.ne.s32.totalorder %s62, %s65
    %p74 = scmp.eq.s32.totalorder %s15, 1
    %p75 = por %p73, %p74
    %p76 = scmp.ne.s32.totalorder %s65, %s66
    %p77 = scmp.eq.s32.totalorder %s15, 0
    %p78 = por %p76, %p77
    %p79 = scmp.ne.s32.totalorder %s65, %s66
    %p80 = scmp.eq.s32.totalorder %s16, 1
    %p81 = por %p79, %p80
    %p83 = scmp.ne.s32.totalorder %s66, %s82
    %p84 = scmp.eq.s32.totalorder %s16, 0
    %p85 = por %p83, %p84
    %s87 = sadd.s32 %s86, 1
    %p90 = scmp.eq.s32.totalorder %s10, 1
    %p91 = scmp.ne.s32.totalorder %s86, %s88
    %p92 = scmp.eq.s32.totalorder %s10, 0
    %p93 = por %p91, %p92
    %p94 = scmp.ne.s32.totalorder %s86, %s88
    %p95 = scmp.eq.s32.totalorder %s15, 1
    %p96 = por %p94, %p95
    %p97 = scmp.ne.s32.totalorder %s88, %s89
    %p98 = scmp.eq.s32.totalorder %s15, 0
    %p99 = por %p97, %p98
    %p100 = scmp.ne.s32.totalorder %s88, %s89
    %p101 = scmp.eq.s32.totalorder %s16, 1
    %p102 = por %p100, %p101
    %p104 = scmp.ne.s32.totalorder %s89, %s103
    %p105 = scmp.eq.s32.totalorder %s16, 0
    %p106 = por %p104, %p105
    %s108 = sadd.s32 %s107, 1
    %p111 = scmp.eq.s32.totalorder %s10, 1
    %p112 = scmp.ne.s32.totalorder %s107, %s109
    %p113 = scmp.eq.s32.totalorder %s10, 0
    %p114 = por %p112, %p113
    %p115 = scmp.ne.s32.totalorder %s107, %s109
    %p116 = scmp.eq.s32.totalorder %s15, 1
    %p117 = por %p115, %p116
    %p118 = scmp.ne.s32.totalorder %s109, %s110
    %p119 = scmp.eq.s32.totalorder %s15, 0
    %p120 = por %p118, %p119
    %p121 = scmp.ne.s32.totalorder %s109, %s110
    %p122 = scmp.eq.s32.totalorder %s16, 1
    %p123 = por %p121, %p122
    %p125 = scmp.ne.s32.totalorder %s110, %s124
    %p126 = scmp.eq.s32.totalorder %s16, 0
    %p127 = por %p125, %p126
    %s128 = ssub.s32 %s17, %s29
    %s129 = ssub.s32 %s18, %s25
    %s130 = sor.u32 %s128, %s129
    %p131 = scmp.eq.s32.totalorder %s130, 0
    %s133 = sadd.s32 %s132, 1
    %s134 = scalar_select %p131, %s132, %s133
    %p137 = pneg %p131
    %p138 = scmp.eq.s32.totalorder %s10, 1
    %p139 = por %p137, %p138
    %p140 = scmp.ne.s32.totalorder %s132, %s135
    %p141 = scmp.eq.s32.totalorder %s10, 0
    %p142 = por %p140, %p141
    %p143 = scmp.ne.s32.totalorder %s132, %s135
    %p144 = scmp.eq.s32.totalorder %s15, 1
    %p145 = por %p143, %p144
    %p146 = scmp.ne.s32.totalorder %s135, %s136
    %p147 = scmp.eq.s32.totalorder %s15, 0
    %p148 = por %p146, %p147
    %p149 = scmp.ne.s32.totalorder %s135, %s136
    %p150 = scmp.eq.s32.totalorder %s16, 1
    %p151 = por %p149, %p150
    %p153 = scmp.ne.s32.totalorder %s136, %s152
    %p154 = scmp.eq.s32.totalorder %s16, 0
    %p155 = por %p153, %p154
    %p156 = scmp.le.s32.totalorder 1, %s10
    %p157 = scmp.lt.s32.totalorder %s10, 3
    %p158 = pnand %p156, %p157
    %p159 = pneg %p158
    // Predicated region
    $region9: #{lateral_cat_pallas.1} parent=5 // pred_check
      _
    $region10: #{lateral_cat_pallas.1} parent=5 // pred_check_branch
      %161 = sbr.rel (%p158) target = $region12
    $region11: #{lateral_cat_pallas.1} parent=5 // pred_region
      %s162 = ssub.s32 %s10, 1
      // Predicated region
      $region13: #{lateral_cat_pallas.1} parent=11 // pred_check
        %p163 = pneg %p99
      $region14: #{lateral_cat_pallas.1} parent=11 // pred_check_branch
        %165 = sbr.rel (%p163) target = $region16
      $region15: #{lateral_cat_pallas.1} parent=11 // pred_region
        _
      $region16: #{lateral_cat_pallas.1} parent=11 // pred_fallthru
        _
      // Predicated region
      $region17: #{lateral_cat_pallas.1} parent=11 // pred_check
        %p166 = pneg %p120
      $region18: #{lateral_cat_pallas.1} parent=11 // pred_check_branch
        %168 = sbr.rel (%p166) target = $region20
      $region19: #{lateral_cat_pallas.1} parent=11 // pred_region
        _
      $region20: #{lateral_cat_pallas.1} parent=11 // pred_fallthru
        _
    $region12: #{lateral_cat_pallas.1} parent=5 // pred_fallthru
      _
    %p169 = scmp.lt.s32.totalorder %s10, 2
    // Predicated region
    $region21: #{lateral_cat_pallas.1} parent=5 // pred_check
      %p170 = pneg %p169
    $region22: #{lateral_cat_pallas.1} parent=5 // pred_check_branch
      %172 = sbr.rel (%p170) target = $region24
    $region23: #{lateral_cat_pallas.1} parent=5 // pred_region
      // Predicated region
      $region25: #{lateral_cat_pallas.1} parent=23 // pred_check
        %p173 = pneg %p44
      $region26: #{lateral_cat_pallas.1} parent=23 // pred_check_branch
        %175 = sbr.rel (%p173) target = $region28
      $region27: #{lateral_cat_pallas.1} parent=23 // pred_region
        %s176 = smul.u32 2, %s18
        %p177 = scmp.lt.s32.totalorder %s17, 1
        %s178 = scalar_select %p177, %s17, 1
        %p179 = scmp.lt.s32.totalorder %s176, 1
        %s180 = scalar_select %p179, %s176, 1
        %s181 = smul.addr %s178, 2
        %s182 = sadd.s32 %s180, %s181
        %s183 = smul.addr %s182, 4
        %s184 = scalar_lea.vmem %s0, %s183
        %s185 = smul.u32 2, %s18
      $region28: #{lateral_cat_pallas.1} parent=23 // pred_fallthru
        _
      // Predicated region
      $region29: #{lateral_cat_pallas.1} parent=23 // pred_check
        %p186 = pneg %p72
      $region30: #{lateral_cat_pallas.1} parent=23 // pred_check_branch
        %188 = sbr.rel (%p186) target = $region32
      $region31: #{lateral_cat_pallas.1} parent=23 // pred_region
        %s189 = smul.u32 2, %s18
        %p190 = scmp.lt.s32.totalorder %s17, 1
        %s191 = scalar_select %p190, %s17, 1
        %p192 = scmp.lt.s32.totalorder %s189, 1
        %s193 = scalar_select %p192, %s189, 1
        %s194 = smul.addr %s191, 2
        %s195 = sadd.s32 %s193, %s194
        %s196 = smul.addr %s195, 8
        %s197 = scalar_lea.vmem %s1, %s196
        %s198 = smul.u32 2, %s18
      $region32: #{lateral_cat_pallas.1} parent=23 // pred_fallthru
        _
    $region24: #{lateral_cat_pallas.1} parent=5 // pred_fallthru
      _
    %p199 = scmp.le.s32.totalorder 1, %s10
    %p200 = scmp.lt.s32.totalorder %s10, 3
    %p201 = pnand %p199, %p200
    %p202 = pneg %p201
    // Predicated region
    $region33: #{lateral_cat_pallas.1} parent=5 // pred_check
      _
    $region34: #{lateral_cat_pallas.1} parent=5 // pred_check_branch
      %204 = sbr.rel (%p201) target = $region36
    $region35: #{lateral_cat_pallas.1} parent=5 // pred_region
      %s205 = ssub.s32 %s10, 1
      %s206 = smul.u32 2, %s20
      %p207 = scmp.lt.s32.totalorder %s19, 1
      %s208 = scalar_select %p207, %s19, 1
      %p209 = scmp.lt.s32.totalorder %s206, 1
      %s210 = scalar_select %p209, %s206, 1
      %s211 = smul.addr %s208, 2
      %s212 = sadd.s32 %s210, %s211
      %s213 = smul.addr %s212, 4
      %s214 = scalar_lea.vmem %s0, %s213
      %p215 = pneg %p50
      %p216 = pneg %p47
      %s217 = smul.u32 2, %s20
      %p218 = scmp.lt.s32.totalorder %s19, 1
      %s219 = scalar_select %p218, %s19, 1
      %p220 = scmp.lt.s32.totalorder %s217, 1
      %s221 = scalar_select %p220, %s217, 1
      %s222 = smul.addr %s219, 2
      %s223 = sadd.s32 %s221, %s222
      %s224 = smul.addr %s223, 8
      %s225 = scalar_lea.vmem %s1, %s224
      %p226 = pneg %p78
      %p227 = pneg %p75
      %p228 = pneg %p99
      %p229 = pneg %p96
      %p230 = pneg %p120
      %p231 = pneg %p117
      %p232 = pneg %p148
      %p233 = pneg %p145
      %s234 = smul.u32 2, %s20
      %p235 = scmp.lt.s32.totalorder %s19, 1
      %s236 = scalar_select %p235, %s19, 1
      %p237 = scmp.lt.s32.totalorder %s234, 1
      %s238 = scalar_select %p237, %s234, 1
      %s239 = smul.addr %s236, 4
      %s240 = sadd.s32 %s238, %s239
      %s241 = smul.addr %s240, 8
      %s242 = scalar_lea.vmem %s4, %s241
      %s243 = smul.u32 2, %s20
      %p244 = scmp.lt.s32.totalorder %s19, 1
      %s245 = scalar_select %p244, %s19, 1
      %p246 = scmp.lt.s32.totalorder %s243, 1
      %s247 = scalar_select %p246, %s243, 1
      %s248 = smul.addr %s245, 2
      %s249 = sadd.s32 %s247, %s248
      %s250 = smul.addr %s249, 4
      %s251 = scalar_lea.vmem %s0, %s250
      %s252 = smul.u32 2, %s20
      %s253 = smul.u32 2, %s20
      %p254 = scmp.lt.s32.totalorder %s19, 1
      %s255 = scalar_select %p254, %s19, 1
      %p256 = scmp.lt.s32.totalorder %s253, 1
      %s257 = scalar_select %p256, %s253, 1
      %s258 = smul.addr %s255, 2
      %s259 = sadd.s32 %s257, %s258
      %s260 = smul.addr %s259, 8
      %s261 = scalar_lea.vmem %s1, %s260
      %s262 = smul.u32 2, %s20
      %s263 = smul.u32 2, %s20
      %p264 = scmp.lt.s32.totalorder %s19, 1
      %s265 = scalar_select %p264, %s19, 1
      %p266 = scmp.lt.s32.totalorder %s263, 1
      %s267 = scalar_select %p266, %s263, 1
      %s268 = smul.addr %s265, 4
      %s269 = sadd.s32 %s267, %s268
      %s270 = smul.addr %s269, 8
      %s271 = scalar_lea.vmem %s4, %s270
      %s272 = smul.u32 2, %s20
      %v273 = vld [vmem:[%s2] sm:$0xff]
      %v274 = vld [vmem:[%s251] sm:$0xff]
      %v275 = vld [vmem:[%s3] sm:$0xff]
      %277 = vset.pattern.permute.xlu0 0
      %278 = vperm.xlu0 %277, %v275
      %v279 = vpop.permute.xlu0 %278
      %v282 = vcombine.high %v274, %v274
      %vm283 = vcmask 31744
      %v285 = vsel %vm283, %v273, 0
      %vm287 = vcmask 1043456
      %v288 = vsel %vm287, %v274, 0
      %v290 = vsel %vm287, %v282, 0
      %292 = vmatprep.subr.mxu0 0.0
      %293 = vmatpush1.msra.mxu0 0.0
      %294 = vmatprep.subr.mxu0 0.0
      %295 = vmatpush1.msra.mxu0 0.0
      %296 = vmatprep.subr.mxu0 0.0
      %297 = vmatpush1.msra.mxu0 0.0
      %298 = vmatprep.subr.mxu0 0.0
      %299 = vmatpush1.msra.mxu0 0.0
      %300 = vmatprep.subr.mxu0 0.0
      %301 = vmatpush1.msra.mxu0 0.0
      %302 = vmatprep.subr.mxu0 0.0
      %303 = vmatpush1.msra.mxu0 0.0
      %304 = vmatprep.subr.mxu0 0.0
      %305 = vmatpush1.msra.mxu0 0.0
      %306 = vmatprep.subr.mxu0 0.0
      %307 = vmatpush1.msra.mxu0 0.0
      %308 = vmatprep.subr.mxu0 0.0
      %309 = vmatpush1.msra.mxu0 0.0
      %310 = vmatprep.subr.mxu0 0.0
      %311 = vmatpush1.msra.mxu0 0.0
      %312 = vmatprep.subr.mxu0 0.0
      %313 = vmatpush1.msra.mxu0 0.0
      %314 = vmatprep.subr.mxu0 0.0
      %315 = vmatpush1.msra.mxu0 0.0
      %316 = vmatprep.subr.mxu0 0.0
      %317 = vmatpush1.msra.mxu0 0.0
      %318 = vmatprep.subr.mxu0 0.0
      %319 = vmatpush1.msra.mxu0 0.0
      %320 = vmatprep.subr.mxu0 0.0
      %321 = vmatpush1.msra.mxu0 0.0
      %322 = vmatprep.subr.mxu0 %v290
      %323 = vmatpush1.msra.mxu0 %v288
      %324 = vmatprep.subr.mxu0 0.0
      %325 = vmatpush2.msra.mxu0 0.0
      %326 = vmatprep.subr.mxu0 0.0
      %327 = vmatpush2.msra.mxu0 0.0
      %328 = vmatprep.subr.mxu0 0.0
      %329 = vmatpush2.msra.mxu0 0.0
      %330 = vmatprep.subr.mxu0 0.0
      %331 = vmatpush2.msra.mxu0 0.0
      %332 = vmatprep.subr.mxu0 0.0
      %333 = vmatpush2.msra.mxu0 0.0
      %334 = vmatprep.subr.mxu0 0.0
      %335 = vmatpush2.msra.mxu0 0.0
      %336 = vmatprep.subr.mxu0 0.0
      %337 = vmatpush2.msra.mxu0 0.0
      %338 = vmatprep.subr.mxu0 0.0
      %339 = vmatpush2.msra.mxu0 0.0
      %340 = vmatprep.subr.mxu0 0.0
      %341 = vmatpush2.msra.mxu0 0.0
      %342 = vmatprep.subr.mxu0 0.0
      %343 = vmatpush2.msra.mxu0 0.0
      %344 = vmatprep.subr.mxu0 0.0
      %345 = vmatpush2.msra.mxu0 0.0
      %346 = vmatprep.subr.mxu0 0.0
      %347 = vmatpush2.msra.mxu0 0.0
      %348 = vmatprep.subr.mxu0 0.0
      %349 = vmatpush2.msra.mxu0 0.0
      %350 = vmatprep.subr.mxu0 0.0
      %351 = vmatpush2.msra.mxu0 0.0
      %352 = vmatprep.subr.mxu0 0.0
      %353 = vmatpush2.msra.mxu0 0.0
      %354 = vmatprep.subr.mxu0 0.0
      %355 = vmatpush2.msra.mxu0 0.0
      %356 = vmatprep.mubr.f32.mxu0 0.0
      %357 = vmatmul.mubr.f32.gmra.mxu0 %v285
      %v358 = vpop.f32.mrf.mxu0
      %v359 = vadd.f32 %v279, %v358
      %v360 = vpop.f32.mrf.mxu0
      %v361 = vadd.f32 %v279, %v360
      %362 = vdwg.mxu0
      %vm363 = vcmp.gt.f32.partialorder %v359, 0.0
      %vm364 = vcmp.gt.f32.partialorder %v361, 0.0
      %v365 = vmul.f32 %v359, 0.1
      %v366 = vmul.f32 %v361, 0.1
      %v367 = vsel %vm363, %v359, %v365
      %v368 = vsel %vm364, %v361, %v366
      %369 = vst [vmem:[%s271] sm:$0xff] %v367
      %370 = vst [vmem:[%s271 + $0x8] sm:$0xff] %v368
      %v371 = vld [vmem:[%s261] sm:$0xff]
      %v372 = vld [vmem:[%s261 + $0x8] sm:$0xff]
      %373 = vst [vmem:[%s271 + $0x10] sm:$0xff] %v371
      %374 = vst [vmem:[%s271 + $0x18] sm:$0xff] %v372
      %s375 = smul.u32 2, %s20
      %p376 = scmp.lt.s32.totalorder %s19, 1
      %s377 = scalar_select %p376, %s19, 1
      %p378 = scmp.lt.s32.totalorder %s375, 1
      %s379 = scalar_select %p378, %s375, 1
      %s380 = smul.addr %s377, 4
      %s381 = sadd.s32 %s379, %s380
      %s382 = smul.addr %s381, 8
      %s383 = scalar_lea.vmem %s4, %s382
      // Predicated region
      $region37: #{lateral_cat_pallas.1} parent=35 // pred_check
        %p384 = pneg %p145
      $region38: #{lateral_cat_pallas.1} parent=35 // pred_check_branch
        %386 = sbr.rel (%p384) target = $region40
      $region39: #{lateral_cat_pallas.1} parent=35 // pred_region
        %s387 = smul.u32 2, %s20
      $region40: #{lateral_cat_pallas.1} parent=35 // pred_fallthru
        _
    $region36: #{lateral_cat_pallas.1} parent=5 // pred_fallthru
      _
    %p388 = scmp.le.s32.totalorder 2, %s10
    // Predicated region
    $region41: #{lateral_cat_pallas.1} parent=5 // pred_check
      %p389 = pneg %p388
    $region42: #{lateral_cat_pallas.1} parent=5 // pred_check_branch
      %391 = sbr.rel (%p389) target = $region44
    $region43: #{lateral_cat_pallas.1} parent=5 // pred_region
      %s392 = ssub.s32 %s10, 2
      // Predicated region
      $region45: #{lateral_cat_pallas.1} parent=43 // pred_check
        %p393 = pneg %p151
      $region46: #{lateral_cat_pallas.1} parent=43 // pred_check_branch
        %395 = sbr.rel (%p393) target = $region48
      $region47: #{lateral_cat_pallas.1} parent=43 // pred_region
        %s396 = smul.u32 2, %s22
        %p397 = scmp.lt.s32.totalorder %s21, 1
        %s398 = scalar_select %p397, %s21, 1
        %p399 = scmp.lt.s32.totalorder %s396, 1
        %s400 = scalar_select %p399, %s396, 1
        %s401 = smul.addr %s398, 4
        %s402 = sadd.s32 %s400, %s401
        %s403 = smul.addr %s402, 8
        %s404 = scalar_lea.vmem %s4, %s403
      $region48: #{lateral_cat_pallas.1} parent=43 // pred_fallthru
        _
    $region44: #{lateral_cat_pallas.1} parent=5 // pred_fallthru
      _
  $region6: #{lateral_cat_pallas.1} parent=0 // loop_footer
    %s14 = sadd.s32 1, %s10
  $region7: #{lateral_cat_pallas.1} parent=0 // loop_footer_branch
    %9 = sbr.rel target = $region3
  $region8: #{lateral_cat_pallas.1} parent=0 // loop_exit
    _

</llo_original>
